<compile_context>
chip_gen: v5e
topology: v5e:2x2
jax: 0.10.0
libtpu: 0.0.40
codegen_flags: <defaults>
</compile_context>

<pallas_src>
import functools

import jax
import jax.numpy as jnp
from jax.experimental import pallas as pl
from jax.experimental.pallas import tpu as pltpu


def _round_up(x, m):
    return (x + m - 1) // m * m


def _vmem_budget_bytes():
    """~80% of physical VMEM, capped at 100 MiB (fallback assumes v7x's 64 MiB)."""
    cap = 64 * 1024 * 1024
    try:
        info = pltpu.get_tpu_info()
        cap = int(getattr(info, "vmem_capacity_bytes", cap) or cap)
    except Exception:
        pass
    return min(int(cap * 0.8), 100 * 1024 * 1024)


def _pick_bblk(B, Hh, Wh, OH, OW, cinp, npad, in_sz, out_sz, budget):
    """Largest divisor of B whose double-buffered blocks (+acc, +weights) fit the budget."""
    x_img = 2 * Hh * Wh * 2 * cinp * in_sz          # per-image parity-split block
    o_img = OH * OW * npad * out_sz                 # per-image output block
    a_img = OH * OW * npad * 4                      # per-image f32 accumulator
    fixed = 2 * (3 * 3 * cinp * npad * in_sz) + 2 * (npad * 4)   # resident w + b (2-buffered)
    best = 1
    for bblk in range(1, B + 1):
        if B % bblk:
            continue
        need = 2 * bblk * x_img + 2 * bblk * o_img + bblk * a_img + fixed
        if need * 1.25 <= budget:
            best = bblk
    return best


def _downsample_conv_kernel(x_ref, w_ref, b_ref, o_ref, *, bblk, oh, ow, cinp):
    """Bblk padded images -> (bblk, OH*OW, npad) lane-dense output block.

    x_ref: (bblk, 2, Hh, Wh, 2*cinp)  hp-outermost parity-split padded NHWC:
           x_ref[b, hp, hh, wh, wp*cinp + c] == x_pad[b, 2*hh+hp, 2*wh+wp, c]
    w_ref: (3, 3*cinp, npad)          per-kh K-stacked weights (rows: kw0|kw1|kw2), zero-padded
    b_ref: (1, npad)                  f32 bias, zero-padded
    o_ref: (bblk, oh*ow, npad)        output block
    """
    npad = b_ref.shape[-1]
    m = bblk * oh * ow
    acc = jnp.zeros((m, npad), jnp.float32)
    # 3x3 stride-2 conv == 6 accumulated MXU matmuls (kw0/kw1 merged into K=2*cinp).
    for kh in range(3):
        hh0, hp = kh // 2, kh % 2
        # kw=0 and kw=1 in one pass: full 2*cinp lane slice -> K = 2*cinp.
        v01 = x_ref[:, hp, pl.ds(hh0, oh), pl.ds(0, ow), :]
        acc += jnp.dot(v01.reshape(m, 2 * cinp),
                       w_ref[kh, pl.ds(0, 2 * cinp), :],
                       preferred_element_type=jnp.float32)
        # kw=2: next half-column (wp=0) -> K = cinp.
        v2 = x_ref[:, hp, pl.ds(hh0, oh), pl.ds(1, ow), pl.ds(0, cinp)]
        acc += jnp.dot(v2.reshape(m, cinp),
                       w_ref[kh, pl.ds(2 * cinp, cinp), :],
                       preferred_element_type=jnp.float32)
    o_ref[...] = (acc + b_ref[...]).reshape(bblk, oh * ow, npad).astype(o_ref.dtype)


def _downsample_core(x_r, weight, bias, *, OH, OW, compute_dtype, out_dtype):
    """x_r: (B, 2, Hh, Wh, 2*cinp) parity-split input. Returns (B, OH*OW, npad)."""
    B, _, Hh, Wh, lane = x_r.shape
    cinp = lane // 2
    Cout, Cin = weight.shape[0], weight.shape[1]
    npad = _round_up(Cout, 128)        # lane-dense output width (unmasked stores)

    # weight (Cout, Cin, 3, 3) -> (3[kh], 3[kw], cinp, npad) -> per-kh K-stacked (3, 3*cinp, npad)
    w_t = jnp.transpose(weight, (2, 3, 1, 0))
    w_t = jnp.pad(w_t, ((0, 0), (0, 0), (0, cinp - Cin), (0, npad - Cout)))
    w_r = w_t.reshape(3, 3 * cinp, npad).astype(compute_dtype)
    b_r = jnp.pad(bias, (0, npad - Cout)).astype(jnp.float32).reshape(1, npad)

    in_sz = jnp.dtype(compute_dtype).itemsize
    out_sz = jnp.dtype(out_dtype).itemsize
    budget = _vmem_budget_bytes()
    bblk = _pick_bblk(B, Hh, Wh, OH, OW, cinp, npad, in_sz, out_sz, budget)

    kernel = functools.partial(_downsample_conv_kernel,
                               bblk=bblk, oh=OH, ow=OW, cinp=cinp)

    bytes_accessed = (x_r.size * in_sz + w_r.size * in_sz + b_r.size * 4
                      + B * OH * OW * npad * out_sz)
    cost = pl.CostEstimate(flops=2 * B * OH * OW * 9 * cinp * npad,
                           transcendentals=0,
                           bytes_accessed=bytes_accessed)

    out = pl.pallas_call(
        kernel,
        out_shape=jax.ShapeDtypeStruct((B, OH * OW, npad), out_dtype),
        grid_spec=pltpu.PrefetchScalarGridSpec(
            num_scalar_prefetch=0,
            grid=(B // bblk,),
            in_specs=[
                pl.BlockSpec((bblk, 2, Hh, Wh, 2 * cinp),
                             lambda b: (b, 0, 0, 0, 0)),
                # Weights/bias resident across the grid (constant index_map).
                # TODO(synk): for very large cinp*npad on v7x, reclaim the second
                # buffer via pipeline_mode=pl.Buffered(1) or a one-shot scratch DMA.
                pl.BlockSpec((3, 3 * cinp, npad), lambda b: (0, 0, 0)),
                pl.BlockSpec((1, npad), lambda b: (0, 0)),
            ],
            out_specs=pl.BlockSpec((bblk, OH * OW, npad), lambda b: (b, 0, 0)),
        ),
        compiler_params=pltpu.CompilerParams(
            dimension_semantics=("parallel",),
            vmem_limit_bytes=budget),
        cost_estimate=cost,
    )(x_r, w_r, b_r)
    return out


def downsample_block_nhwc(x_nhwc, weight, bias, *, compute_dtype=jnp.bfloat16):
    """NHWC fast path (no NCHW transposes): (B,H,W,C) -> (B,OH,OW,Cout)."""
    B, H, W, C = x_nhwc.shape
    Cout, Cin, KH, KW = weight.shape
    assert Cin == C and KH == 3 and KW == 3
    OH = (H + 1 - 3) // 2 + 1
    OW = (W + 1 - 3) // 2 + 1
    Hh, Wh = OH + 1, OW + 1
    He, We = 2 * Hh, 2 * Wh
    cinp = _round_up(C, 8)

    # Bottom/right zero pad (covers F.pad(0,1,0,1); extra padded rows/cols are
    # only ever read as zeros), channel zero pad, parity split, hp outermost.
    x = jnp.pad(x_nhwc, ((0, 0), (0, He - H), (0, We - W), (0, cinp - C)))
    x = x.reshape(B, Hh, 2, Wh, 2 * cinp)
    x_r = jnp.transpose(x, (0, 2, 1, 3, 4)).astype(compute_dtype)

    out = _downsample_core(x_r, weight, bias, OH=OH, OW=OW,
                           compute_dtype=compute_dtype, out_dtype=x_nhwc.dtype)
    return out[:, :, :Cout].reshape(B, OH, OW, Cout)


def downsample_block(x_nchw, weight, bias, *, compute_dtype=jnp.bfloat16):
    """Equivalent of PyTorch DownSampleBlock.forward:
         x = F.pad(x, (0,1,0,1), value=0);  return nn.Conv2d(C, C, 3, 2, 0)(x)
    x_nchw: (B, C, H, W), weight: (Cout, Cin, 3, 3), bias: (Cout,)
    returns (B, Cout, OH, OW).  compute_dtype=float32 is the bit-matching debug
    path; the default bf16 feed keeps f32 accumulation on the MXU.
    """
    B, C, H, W = x_nchw.shape
    Cout, Cin, KH, KW = weight.shape
    assert Cin == C and KH == 3 and KW == 3
    OH = (H + 1 - 3) // 2 + 1
    OW = (W + 1 - 3) // 2 + 1
    Hh, Wh = OH + 1, OW + 1
    He, We = 2 * Hh, 2 * Wh
    cinp = _round_up(C, 8)

    # Single transpose pass fusing NCHW->NHWC with the hp-outer parity split:
    # x_r[b, hp, hh, wh, wp*cinp + c] == x_pad_nhwc[b, 2*hh+hp, 2*wh+wp, c]
    x = jnp.pad(x_nchw, ((0, 0), (0, cinp - C), (0, He - H), (0, We - W)))
    x = x.reshape(B, cinp, Hh, 2, Wh, 2)
    x_r = (jnp.transpose(x, (0, 3, 2, 4, 5, 1))
              .reshape(B, 2, Hh, Wh, 2 * cinp)
              .astype(compute_dtype))

    out = _downsample_core(x_r, weight, bias, OH=OH, OW=OW,
                           compute_dtype=compute_dtype, out_dtype=x_nchw.dtype)
    out = out[:, :, :Cout].reshape(B, OH, OW, Cout)
    # TODO(synk): the NCHW<->NHWC transposes exist only to match the PyTorch API;
    # use downsample_block_nhwc in an NHWC model to drop two full HBM passes.
    return jnp.transpose(out, (0, 3, 1, 2))


if __name__ == "__main__":
    key = jax.random.PRNGKey(0)
    kx, kw_, kb = jax.random.split(key, 3)

    B, C, H, W = 2, 4, 16, 16
    x = jax.random.normal(kx, (B, C, H, W), dtype=jnp.float32)

    # Deterministic Conv2d(C, C, 3) init (PyTorch-style uniform bound 1/sqrt(fan_in)).
    fan_in = C * 3 * 3
    bound = 1.0 / (fan_in ** 0.5)
    weight = jax.random.uniform(kw_, (C, C, 3, 3), minval=-bound, maxval=bound,
                                dtype=jnp.float32)
    bias = jax.random.uniform(kb, (C,), minval=-bound, maxval=bound,
                              dtype=jnp.float32)

    OH = (H + 1 - 3) // 2 + 1
    OW = (W + 1 - 3) // 2 + 1

    # Reference: F.pad(x, (0,1,0,1)) then stride-2 VALID conv + bias.
    x_pad = jnp.pad(x, ((0, 0), (0, 0), (0, 1), (0, 1)))
    ref = jax.lax.conv_general_dilated(
        x_pad, weight, window_strides=(2, 2), padding="VALID",
        dimension_numbers=("NCHW", "OIHW", "NCHW"),
        precision=jax.lax.Precision.HIGHEST)
    ref = ref + bias[None, :, None, None]

    # f32 debug path: exact module semantics.
    out_f32 = jax.block_until_ready(
        downsample_block(x, weight, bias, compute_dtype=jnp.float32))
    assert out_f32.shape == (B, C, OH, OW)
    assert jnp.allclose(out_f32, ref, atol=1e-4, rtol=1e-4)

    # Default bf16-fed path (f32 accumulation): only input-rounding error.
    out_bf16 = jax.block_until_ready(downsample_block(x, weight, bias))
    assert out_bf16.shape == (B, C, OH, OW)
    assert jnp.allclose(out_bf16, ref, atol=5e-2, rtol=5e-2)

    # NHWC fast path (no NCHW transposes).
    x_nhwc = jnp.transpose(x, (0, 2, 3, 1))
    out_nhwc = jax.block_until_ready(downsample_block_nhwc(x_nhwc, weight, bias))
    assert out_nhwc.shape == (B, OH, OW, C)
    assert jnp.allclose(jnp.transpose(out_nhwc, (0, 3, 1, 2)), ref,
                        atol=5e-2, rtol=5e-2)

    print("KERNEL_OK")
</pallas_src>

<mosaic_0001>
module attributes {stable_mosaic.version = 11 : i64} {
  func.func @_downsample_conv_kernel(%arg0: i32, %arg1: memref<2x2x9x9x16xf32, #tpu.memory_space<vmem>>, %arg2: memref<3x24x128xf32, #tpu.memory_space<vmem>>, %arg3: memref<1x128xf32, #tpu.memory_space<vmem>>, %arg4: memref<2x64x128xf32, #tpu.memory_space<vmem>>) attributes {dimension_semantics = [#tpu.dimension_semantics<parallel>], iteration_bounds = array<i64: 1>, scalar_prefetch = 0 : i64, scratch_operands = 0 : i64, tpu.core_type = #tpu.core_type<tc>, window_params = [{transform_indices = @transform_0, window_bounds = array<i64: 2, 2, 9, 9, 16>}, {pipeline_mode = #tpu.pipeline_mode<synchronous>, transform_indices = @transform_1, window_bounds = array<i64: 3, 24, 128>}, {pipeline_mode = #tpu.pipeline_mode<synchronous>, transform_indices = @transform_2, window_bounds = array<i64: 1, 128>}, {transform_indices = @transform_3, window_bounds = array<i64: 2, 64, 128>}]} {
    %cst = arith.constant 0.000000e+00 : f32
    %0 = vector.broadcast %cst : f32 to vector<128x128xf32>
    %c0 = arith.constant 0 : index
    %c0_0 = arith.constant 0 : index
    %c0_1 = arith.constant 0 : index
    %c0_2 = arith.constant 0 : index
    %c0_3 = arith.constant 0 : index
    %1 = vector.load %arg1[%c0, %c0_0, %c0_1, %c0_2, %c0_3] : memref<2x2x9x9x16xf32, #tpu.memory_space<vmem>>, vector<2x1x8x8x16xf32>
    %2 = vector.shape_cast %1 : vector<2x1x8x8x16xf32> to vector<2x8x8x16xf32>
    %3 = vector.shape_cast %2 : vector<2x8x8x16xf32> to vector<128x16xf32>
    %c0_4 = arith.constant 0 : index
    %c0_5 = arith.constant 0 : index
    %c0_6 = arith.constant 0 : index
    %4 = vector.load %arg2[%c0_4, %c0_5, %c0_6] : memref<3x24x128xf32, #tpu.memory_space<vmem>>, vector<1x16x128xf32>
    %5 = vector.shape_cast %4 : vector<1x16x128xf32> to vector<16x128xf32>
    %cst_7 = arith.constant dense<0.000000e+00> : vector<128x128xf32>
    %6 = tpu.matmul %3, %5, %cst_7 {dimension_numbers = #tpu.dot_dimension_numbers<[1], [0], [0], [1], [0, 0, 1, 1], [], []>} : vector<128x16xf32>, vector<16x128xf32>, vector<128x128xf32> -> vector<128x128xf32>
    %7 = arith.addf %0, %6 : vector<128x128xf32>
    %c0_8 = arith.constant 0 : index
    %c0_9 = arith.constant 0 : index
    %c0_10 = arith.constant 0 : index
    %c1 = arith.constant 1 : index
    %c0_11 = arith.constant 0 : index
    %8 = vector.load %arg1[%c0_8, %c0_9, %c0_10, %c1, %c0_11] : memref<2x2x9x9x16xf32, #tpu.memory_space<vmem>>, vector<2x1x8x8x8xf32>
    %9 = vector.shape_cast %8 : vector<2x1x8x8x8xf32> to vector<2x8x8x8xf32>
    %10 = vector.shape_cast %9 : vector<2x8x8x8xf32> to vector<128x8xf32>
    %c0_12 = arith.constant 0 : index
    %c16 = arith.constant 16 : index
    %c0_13 = arith.constant 0 : index
    %11 = vector.load %arg2[%c0_12, %c16, %c0_13] : memref<3x24x128xf32, #tpu.memory_space<vmem>>, vector<1x8x128xf32>
    %12 = vector.shape_cast %11 : vector<1x8x128xf32> to vector<8x128xf32>
    %cst_14 = arith.constant dense<0.000000e+00> : vector<128x128xf32>
    %13 = tpu.matmul %10, %12, %cst_14 {dimension_numbers = #tpu.dot_dimension_numbers<[1], [0], [0], [1], [0, 0, 1, 1], [], []>} : vector<128x8xf32>, vector<8x128xf32>, vector<128x128xf32> -> vector<128x128xf32>
    %14 = arith.addf %7, %13 : vector<128x128xf32>
    %c0_15 = arith.constant 0 : index
    %c1_16 = arith.constant 1 : index
    %c0_17 = arith.constant 0 : index
    %c0_18 = arith.constant 0 : index
    %c0_19 = arith.constant 0 : index
    %15 = vector.load %arg1[%c0_15, %c1_16, %c0_17, %c0_18, %c0_19] : memref<2x2x9x9x16xf32, #tpu.memory_space<vmem>>, vector<2x1x8x8x16xf32>
    %16 = vector.shape_cast %15 : vector<2x1x8x8x16xf32> to vector<2x8x8x16xf32>
    %17 = vector.shape_cast %16 : vector<2x8x8x16xf32> to vector<128x16xf32>
    %c1_20 = arith.constant 1 : index
    %c0_21 = arith.constant 0 : index
    %c0_22 = arith.constant 0 : index
    %18 = vector.load %arg2[%c1_20, %c0_21, %c0_22] : memref<3x24x128xf32, #tpu.memory_space<vmem>>, vector<1x16x128xf32>
    %19 = vector.shape_cast %18 : vector<1x16x128xf32> to vector<16x128xf32>
    %cst_23 = arith.constant dense<0.000000e+00> : vector<128x128xf32>
    %20 = tpu.matmul %17, %19, %cst_23 {dimension_numbers = #tpu.dot_dimension_numbers<[1], [0], [0], [1], [0, 0, 1, 1], [], []>} : vector<128x16xf32>, vector<16x128xf32>, vector<128x128xf32> -> vector<128x128xf32>
    %21 = arith.addf %14, %20 : vector<128x128xf32>
    %c0_24 = arith.constant 0 : index
    %c1_25 = arith.constant 1 : index
    %c0_26 = arith.constant 0 : index
    %c1_27 = arith.constant 1 : index
    %c0_28 = arith.constant 0 : index
    %22 = vector.load %arg1[%c0_24, %c1_25, %c0_26, %c1_27, %c0_28] : memref<2x2x9x9x16xf32, #tpu.memory_space<vmem>>, vector<2x1x8x8x8xf32>
    %23 = vector.shape_cast %22 : vector<2x1x8x8x8xf32> to vector<2x8x8x8xf32>
    %24 = vector.shape_cast %23 : vector<2x8x8x8xf32> to vector<128x8xf32>
    %c1_29 = arith.constant 1 : index
    %c16_30 = arith.constant 16 : index
    %c0_31 = arith.constant 0 : index
    %25 = vector.load %arg2[%c1_29, %c16_30, %c0_31] : memref<3x24x128xf32, #tpu.memory_space<vmem>>, vector<1x8x128xf32>
    %26 = vector.shape_cast %25 : vector<1x8x128xf32> to vector<8x128xf32>
    %cst_32 = arith.constant dense<0.000000e+00> : vector<128x128xf32>
    %27 = tpu.matmul %24, %26, %cst_32 {dimension_numbers = #tpu.dot_dimension_numbers<[1], [0], [0], [1], [0, 0, 1, 1], [], []>} : vector<128x8xf32>, vector<8x128xf32>, vector<128x128xf32> -> vector<128x128xf32>
    %28 = arith.addf %21, %27 : vector<128x128xf32>
    %c0_33 = arith.constant 0 : index
    %c0_34 = arith.constant 0 : index
    %c1_35 = arith.constant 1 : index
    %c0_36 = arith.constant 0 : index
    %c0_37 = arith.constant 0 : index
    %29 = vector.load %arg1[%c0_33, %c0_34, %c1_35, %c0_36, %c0_37] : memref<2x2x9x9x16xf32, #tpu.memory_space<vmem>>, vector<2x1x8x8x16xf32>
    %30 = vector.shape_cast %29 : vector<2x1x8x8x16xf32> to vector<2x8x8x16xf32>
    %31 = vector.shape_cast %30 : vector<2x8x8x16xf32> to vector<128x16xf32>
    %c2 = arith.constant 2 : index
    %c0_38 = arith.constant 0 : index
    %c0_39 = arith.constant 0 : index
    %32 = vector.load %arg2[%c2, %c0_38, %c0_39] : memref<3x24x128xf32, #tpu.memory_space<vmem>>, vector<1x16x128xf32>
    %33 = vector.shape_cast %32 : vector<1x16x128xf32> to vector<16x128xf32>
    %cst_40 = arith.constant dense<0.000000e+00> : vector<128x128xf32>
    %34 = tpu.matmul %31, %33, %cst_40 {dimension_numbers = #tpu.dot_dimension_numbers<[1], [0], [0], [1], [0, 0, 1, 1], [], []>} : vector<128x16xf32>, vector<16x128xf32>, vector<128x128xf32> -> vector<128x128xf32>
    %35 = arith.addf %28, %34 : vector<128x128xf32>
    %c0_41 = arith.constant 0 : index
    %c0_42 = arith.constant 0 : index
    %c1_43 = arith.constant 1 : index
    %c1_44 = arith.constant 1 : index
    %c0_45 = arith.constant 0 : index
    %36 = vector.load %arg1[%c0_41, %c0_42, %c1_43, %c1_44, %c0_45] : memref<2x2x9x9x16xf32, #tpu.memory_space<vmem>>, vector<2x1x8x8x8xf32>
    %37 = vector.shape_cast %36 : vector<2x1x8x8x8xf32> to vector<2x8x8x8xf32>
    %38 = vector.shape_cast %37 : vector<2x8x8x8xf32> to vector<128x8xf32>
    %c2_46 = arith.constant 2 : index
    %c16_47 = arith.constant 16 : index
    %c0_48 = arith.constant 0 : index
    %39 = vector.load %arg2[%c2_46, %c16_47, %c0_48] : memref<3x24x128xf32, #tpu.memory_space<vmem>>, vector<1x8x128xf32>
    %40 = vector.shape_cast %39 : vector<1x8x128xf32> to vector<8x128xf32>
    %cst_49 = arith.constant dense<0.000000e+00> : vector<128x128xf32>
    %41 = tpu.matmul %38, %40, %cst_49 {dimension_numbers = #tpu.dot_dimension_numbers<[1], [0], [0], [1], [0, 0, 1, 1], [], []>} : vector<128x8xf32>, vector<8x128xf32>, vector<128x128xf32> -> vector<128x128xf32>
    %42 = arith.addf %35, %41 : vector<128x128xf32>
    %c0_50 = arith.constant 0 : index
    %c0_51 = arith.constant 0 : index
    %43 = vector.load %arg3[%c0_50, %c0_51] : memref<1x128xf32, #tpu.memory_space<vmem>>, vector<1x128xf32>
    %44 = vector.broadcast %43 : vector<1x128xf32> to vector<128x128xf32>
    %45 = arith.addf %42, %44 : vector<128x128xf32>
    %46 = vector.shape_cast %45 : vector<128x128xf32> to vector<2x64x128xf32>
    %c0_52 = arith.constant 0 : index
    %c0_53 = arith.constant 0 : index
    %c0_54 = arith.constant 0 : index
    %47 = vector.load %arg4[%c0_52, %c0_53, %c0_54] : memref<2x64x128xf32, #tpu.memory_space<vmem>>, vector<2x64x128xf32>
    tpu.vector_store %arg4[%c0_52, %c0_53, %c0_54], %46 {strides = array<i32>} : memref<2x64x128xf32, #tpu.memory_space<vmem>>, vector<2x64x128xf32>,
    return
  }
  func.func @transform_0(%arg0: i32) -> (i32, i32, i32, i32, i32) {
    %c0_i32 = arith.constant 0 : i32
    %c0_i32_0 = arith.constant 0 : i32
    %c0_i32_1 = arith.constant 0 : i32
    %c0_i32_2 = arith.constant 0 : i32
    %c0_i32_3 = arith.constant 0 : i32
    return %arg0, %c0_i32, %c0_i32_0, %c0_i32_1, %c0_i32_2 : i32, i32, i32, i32, i32
  }
  func.func @transform_1(%arg0: i32) -> (i32, i32, i32) {
    %c0_i32 = arith.constant 0 : i32
    %c0_i32_0 = arith.constant 0 : i32
    %c0_i32_1 = arith.constant 0 : i32
    %c0_i32_2 = arith.constant 0 : i32
    return %c0_i32, %c0_i32_0, %c0_i32_1 : i32, i32, i32
  }
  func.func @transform_2(%arg0: i32) -> (i32, i32) {
    %c0_i32 = arith.constant 0 : i32
    %c0_i32_0 = arith.constant 0 : i32
    %c0_i32_1 = arith.constant 0 : i32
    return %c0_i32, %c0_i32_0 : i32, i32
  }
  func.func @transform_3(%arg0: i32) -> (i32, i32, i32) {
    %c0_i32 = arith.constant 0 : i32
    %c0_i32_0 = arith.constant 0 : i32
    %c0_i32_1 = arith.constant 0 : i32
    return %arg0, %c0_i32, %c0_i32_0 : i32, i32, i32
  }
}

</mosaic_0001>

<llo_original>
// kernel: tpu_custom_call.1
$region0: #{tpu_custom_call.1}
  #allocation0 [shape = 'u32[]', space=smem, size = 0x4, offset = 0x4, fixed_abs, tag = 'smem constant byte address 0x4 - core index']
  #allocation1 [shape = 'u32[72,128]{1,0:T(1,128)}', space=vmem, size = 0x9000, scoped, tag = 'internal scratch']
  %s0 = inlined_call_operand.vmem [shape: f32[2,2,9,9,16], index: 0, kind: input, shape index: {}]
  %s1 = inlined_call_operand.vmem [shape: f32[3,24,128], index: 1, kind: input, shape index: {}]
  %s2 = inlined_call_operand.vmem [shape: f32[1,128], index: 2, kind: input, shape index: {}]
  %s3 = inlined_call_operand.hbm [shape: f32[2,64,128], index: 3, kind: output, shape index: {}]
  %s4 = sld [smem:[#allocation0]]
  $region22: #{tpu_custom_call.1} parent=0
    _
  %s6 = ssub.s32 1, %s4
  %s7 = scalar_select 0, %s6, %s4
  $region1: #{tpu_custom_call.1} parent=0
    #allocation2 [shape = 'u8[65536]{0}', space=vmem, size = 0x10000, scoped, tag = 'output window, operand 0, single buffered']
    #allocation3 [shape = 's32[1]{0}', space=sflag, size = 0x4, scoped, tag = 'scoped memory for tpu_custom_call.1']
    %8 = vsyncpa [#allocation3], 0
    // Predicated region
    $region2: #{tpu_custom_call.1} parent=1 // pred_check
      _
    $region3: #{tpu_custom_call.1} parent=1 // pred_check_branch
      %10 = sbr.rel (0) target = $region5
    $region4: #{tpu_custom_call.1} parent=1 // pred_region
      _
    $region5: #{tpu_custom_call.1} parent=1 // pred_fallthru
      _
    // Predicated region
    $region6: #{tpu_custom_call.1} parent=1 // pred_check
      _
    $region7: #{tpu_custom_call.1} parent=1 // pred_check_branch
      %12 = sbr.rel (0) target = $region9
    $region8: #{tpu_custom_call.1} parent=1 // pred_region
      _
    $region9: #{tpu_custom_call.1} parent=1 // pred_fallthru
      _
    // Predicated region
    $region10: #{tpu_custom_call.1} parent=1 // pred_check
      _
    $region11: #{tpu_custom_call.1} parent=1 // pred_check_branch
      %14 = sbr.rel (0) target = $region13
    $region12: #{tpu_custom_call.1} parent=1 // pred_region
      _
    $region13: #{tpu_custom_call.1} parent=1 // pred_fallthru
      _
    %v15 = vld [vmem:[%s0] sm:$0xff]
    %v16 = vld [vmem:[%s0 + $0x10] sm:$0xff]
    %v17 = vld [vmem:[%s0 + $0x20] sm:$0xff]
    %v18 = vld [vmem:[%s0 + $0x30] sm:$0xff]
    %v19 = vld [vmem:[%s0 + $0x40] sm:$0xff]
    %v20 = vld [vmem:[%s0 + $0x50] sm:$0xff]
    %v21 = vld [vmem:[%s0 + $0x60] sm:$0xff]
    %v22 = vld [vmem:[%s0 + $0x70] sm:$0xff]
    %v23 = vld [vmem:[%s0 + $0x120] sm:$0xff]
    %v24 = vld [vmem:[%s0 + $0x130] sm:$0xff]
    %v25 = vld [vmem:[%s0 + $0x140] sm:$0xff]
    %v26 = vld [vmem:[%s0 + $0x150] sm:$0xff]
    %v27 = vld [vmem:[%s0 + $0x160] sm:$0xff]
    %v28 = vld [vmem:[%s0 + $0x170] sm:$0xff]
    %v29 = vld [vmem:[%s0 + $0x180] sm:$0xff]
    %v30 = vld [vmem:[%s0 + $0x190] sm:$0xff]
    %v31 = vld [vmem:[%s1] sm:$0xff]
    %v32 = vld [vmem:[%s1 + $0x8] sm:$0xff]
    %v33 = vld [vmem:[%s0 + $0x1] sm:$0xff]
    %v34 = vld [vmem:[%s0 + $0x11] sm:$0xff]
    %v35 = vld [vmem:[%s0 + $0x21] sm:$0xff]
    %v36 = vld [vmem:[%s0 + $0x31] sm:$0xff]
    %v37 = vld [vmem:[%s0 + $0x41] sm:$0xff]
    %v38 = vld [vmem:[%s0 + $0x51] sm:$0xff]
    %v39 = vld [vmem:[%s0 + $0x61] sm:$0xff]
    %v40 = vld [vmem:[%s0 + $0x71] sm:$0xff]
    %v41 = vld [vmem:[%s0 + $0x121] sm:$0xff]
    %v42 = vld [vmem:[%s0 + $0x131] sm:$0xff]
    %v43 = vld [vmem:[%s0 + $0x141] sm:$0xff]
    %v44 = vld [vmem:[%s0 + $0x151] sm:$0xff]
    %v45 = vld [vmem:[%s0 + $0x161] sm:$0xff]
    %v46 = vld [vmem:[%s0 + $0x171] sm:$0xff]
    %v47 = vld [vmem:[%s0 + $0x181] sm:$0xff]
    %v48 = vld [vmem:[%s0 + $0x191] sm:$0xff]
    %v49 = vld [vmem:[%s1 + $0x10] sm:$0xff]
    %vm50 = vcmask 64512
    %v52 = vsel %vm50, %v33, 0
    %v55 = vsel %vm50, %v34, 0
    %v58 = vsel %vm50, %v35, 0
    %v61 = vsel %vm50, %v36, 0
    %v64 = vsel %vm50, %v37, 0
    %v67 = vsel %vm50, %v38, 0
    %v70 = vsel %vm50, %v39, 0
    %v73 = vsel %vm50, %v40, 0
    %v76 = vsel %vm50, %v41, 0
    %v79 = vsel %vm50, %v42, 0
    %v82 = vsel %vm50, %v43, 0
    %v85 = vsel %vm50, %v44, 0
    %v88 = vsel %vm50, %v45, 0
    %v91 = vsel %vm50, %v46, 0
    %v94 = vsel %vm50, %v47, 0
    %v97 = vsel %vm50, %v48, 0
    %99 = vmatpush.msra.mxu0 0.0
    %100 = vmatpush.msra.mxu0 0.0
    %101 = vmatpush.msra.mxu0 0.0
    %102 = vmatpush.msra.mxu0 0.0
    %103 = vmatpush.msra.mxu0 0.0
    %104 = vmatpush.msra.mxu0 0.0
    %105 = vmatpush.msra.mxu0 0.0
    %106 = vmatpush.msra.mxu0 0.0
    %107 = vmatpush.msra.mxu0 0.0
    %108 = vmatpush.msra.mxu0 0.0
    %109 = vmatpush.msra.mxu0 0.0
    %110 = vmatpush.msra.mxu0 0.0
    %111 = vmatpush.msra.mxu0 0.0
    %112 = vmatpush.msra.mxu0 0.0
    %113 = vmatpush.msra.mxu0 0.0
    %114 = vmatpush.msra.mxu0 %v49
    %115 = vmatmul.f32.gmra.mxu0 %v52
    %v116 = vpop.f32.mrf.mxu0
    %v117 = vadd.f32 0.0, %v116
    %118 = vmatmul.f32.gmra.mxu0 %v55
    %v119 = vpop.f32.mrf.mxu0
    %v120 = vadd.f32 0.0, %v119
    %121 = vmatmul.f32.gmra.mxu0 %v58
    %v122 = vpop.f32.mrf.mxu0
    %v123 = vadd.f32 0.0, %v122
    %124 = vmatmul.f32.gmra.mxu0 %v61
    %v125 = vpop.f32.mrf.mxu0
    %v126 = vadd.f32 0.0, %v125
    %127 = vmatmul.f32.gmra.mxu0 %v64
    %v128 = vpop.f32.mrf.mxu0
    %v129 = vadd.f32 0.0, %v128
    %130 = vmatmul.f32.gmra.mxu0 %v67
    %v131 = vpop.f32.mrf.mxu0
    %v132 = vadd.f32 0.0, %v131
    %133 = vmatmul.f32.gmra.mxu0 %v70
    %v134 = vpop.f32.mrf.mxu0
    %v135 = vadd.f32 0.0, %v134
    %136 = vmatmul.f32.gmra.mxu0 %v73
    %v137 = vpop.f32.mrf.mxu0
    %v138 = vadd.f32 0.0, %v137
    %139 = vmatmul.f32.gmra.mxu0 %v76
    %v140 = vpop.f32.mrf.mxu0
    %v141 = vadd.f32 0.0, %v140
    %142 = vmatmul.f32.gmra.mxu0 %v79
    %v143 = vpop.f32.mrf.mxu0
    %v144 = vadd.f32 0.0, %v143
    %145 = vmatmul.f32.gmra.mxu0 %v82
    %v146 = vpop.f32.mrf.mxu0
    %v147 = vadd.f32 0.0, %v146
    %148 = vmatmul.f32.gmra.mxu0 %v85
    %v149 = vpop.f32.mrf.mxu0
    %v150 = vadd.f32 0.0, %v149
    %151 = vmatmul.f32.gmra.mxu0 %v88
    %v152 = vpop.f32.mrf.mxu0
    %v153 = vadd.f32 0.0, %v152
    %154 = vmatmul.f32.gmra.mxu0 %v91
    %v155 = vpop.f32.mrf.mxu0
    %v156 = vadd.f32 0.0, %v155
    %157 = vmatmul.f32.gmra.mxu0 %v94
    %v158 = vpop.f32.mrf.mxu0
    %v159 = vadd.f32 0.0, %v158
    %160 = vmatmul.f32.gmra.mxu0 %v97
    %v161 = vpop.f32.mrf.mxu0
    %v162 = vadd.f32 0.0, %v161
    %163 = vdwg.mxu0
    %vm164 = vcmask 130048
    %v166 = vsel %vm164, %v15, 0
    %v169 = vsel %vm164, %v16, 0
    %v172 = vsel %vm164, %v17, 0
    %v175 = vsel %vm164, %v18, 0
    %v178 = vsel %vm164, %v19, 0
    %v181 = vsel %vm164, %v20, 0
    %v184 = vsel %vm164, %v21, 0
    %v187 = vsel %vm164, %v22, 0
    %v190 = vsel %vm164, %v23, 0
    %v193 = vsel %vm164, %v24, 0
    %v196 = vsel %vm164, %v25, 0
    %v199 = vsel %vm164, %v26, 0
    %v202 = vsel %vm164, %v27, 0
    %v205 = vsel %vm164, %v28, 0
    %v208 = vsel %vm164, %v29, 0
    %v211 = vsel %vm164, %v30, 0
    %213 = vmatpush.msra.mxu0 0.0
    %214 = vmatpush.msra.mxu0 0.0
    %215 = vmatpush.msra.mxu0 0.0
    %216 = vmatpush.msra.mxu0 0.0
    %217 = vmatpush.msra.mxu0 0.0
    %218 = vmatpush.msra.mxu0 0.0
    %219 = vmatpush.msra.mxu0 0.0
    %220 = vmatpush.msra.mxu0 0.0
    %221 = vmatpush.msra.mxu0 0.0
    %222 = vmatpush.msra.mxu0 0.0
    %223 = vmatpush.msra.mxu0 0.0
    %224 = vmatpush.msra.mxu0 0.0
    %225 = vmatpush.msra.mxu0 0.0
    %226 = vmatpush.msra.mxu0 0.0
    %227 = vmatpush.msra.mxu0 %v32
    %228 = vmatpush.msra.mxu0 %v31
    %229 = vmatmul.f32.gmra.mxu0 %v166
    %v230 = vpop.f32.mrf.mxu0
    %v231 = vadd.f32 %v117, %v230
    %232 = vmatmul.f32.gmra.mxu0 %v169
    %v233 = vpop.f32.mrf.mxu0
    %v234 = vadd.f32 %v120, %v233
    %235 = vmatmul.f32.gmra.mxu0 %v172
    %v236 = vpop.f32.mrf.mxu0
    %v237 = vadd.f32 %v123, %v236
    %238 = vmatmul.f32.gmra.mxu0 %v175
    %v239 = vpop.f32.mrf.mxu0
    %v240 = vadd.f32 %v126, %v239
    %241 = vmatmul.f32.gmra.mxu0 %v178
    %v242 = vpop.f32.mrf.mxu0
    %v243 = vadd.f32 %v129, %v242
    %244 = vmatmul.f32.gmra.mxu0 %v181
    %v245 = vpop.f32.mrf.mxu0
    %v246 = vadd.f32 %v132, %v245
    %247 = vmatmul.f32.gmra.mxu0 %v184
    %v248 = vpop.f32.mrf.mxu0
    %v249 = vadd.f32 %v135, %v248
    %250 = vmatmul.f32.gmra.mxu0 %v187
    %v251 = vpop.f32.mrf.mxu0
    %v252 = vadd.f32 %v138, %v251
    %253 = vmatmul.f32.gmra.mxu0 %v190
    %v254 = vpop.f32.mrf.mxu0
    %v255 = vadd.f32 %v141, %v254
    %256 = vmatmul.f32.gmra.mxu0 %v193
    %v257 = vpop.f32.mrf.mxu0
    %v258 = vadd.f32 %v144, %v257
    %259 = vmatmul.f32.gmra.mxu0 %v196
    %v260 = vpop.f32.mrf.mxu0
    %v261 = vadd.f32 %v147, %v260
    %262 = vmatmul.f32.gmra.mxu0 %v199
    %v263 = vpop.f32.mrf.mxu0
    %v264 = vadd.f32 %v150, %v263
    %265 = vmatmul.f32.gmra.mxu0 %v202
    %v266 = vpop.f32.mrf.mxu0
    %v267 = vadd.f32 %v153, %v266
    %268 = vmatmul.f32.gmra.mxu0 %v205
    %v269 = vpop.f32.mrf.mxu0
    %v270 = vadd.f32 %v156, %v269
    %271 = vmatmul.f32.gmra.mxu0 %v208
    %v272 = vpop.f32.mrf.mxu0
    %v273 = vadd.f32 %v159, %v272
    %274 = vmatmul.f32.gmra.mxu0 %v211
    %v275 = vpop.f32.mrf.mxu0
    %v276 = vadd.f32 %v162, %v275
    %277 = vdwg.mxu0
    %s278 = scalar_lea.vmem %s0, 144
    %v279 = vld [vmem:[%s278] sm:$0xff]
    %v280 = vld [vmem:[%s278 + $0x10] sm:$0xff]
    %v281 = vld [vmem:[%s278 + $0x20] sm:$0xff]
    %v282 = vld [vmem:[%s278 + $0x30] sm:$0xff]
    %v283 = vld [vmem:[%s278 + $0x40] sm:$0xff]
    %v284 = vld [vmem:[%s278 + $0x50] sm:$0xff]
    %v285 = vld [vmem:[%s278 + $0x60] sm:$0xff]
    %v286 = vld [vmem:[%s278 + $0x70] sm:$0xff]
    %v287 = vld [vmem:[%s278 + $0x120] sm:$0xff]
    %v288 = vld [vmem:[%s278 + $0x130] sm:$0xff]
    %v289 = vld [vmem:[%s278 + $0x140] sm:$0xff]
    %v290 = vld [vmem:[%s278 + $0x150] sm:$0xff]
    %v291 = vld [vmem:[%s278 + $0x160] sm:$0xff]
    %v292 = vld [vmem:[%s278 + $0x170] sm:$0xff]
    %v293 = vld [vmem:[%s278 + $0x180] sm:$0xff]
    %v294 = vld [vmem:[%s278 + $0x190] sm:$0xff]
    %s295 = scalar_lea.vmem %s1, 24
    %v296 = vld [vmem:[%s295] sm:$0xff]
    %v297 = vld [vmem:[%s295 + $0x8] sm:$0xff]
    %v299 = vsel %vm164, %v279, 0
    %v302 = vsel %vm164, %v280, 0
    %v305 = vsel %vm164, %v281, 0
    %v308 = vsel %vm164, %v282, 0
    %v311 = vsel %vm164, %v283, 0
    %v314 = vsel %vm164, %v284, 0
    %v317 = vsel %vm164, %v285, 0
    %v320 = vsel %vm164, %v286, 0
    %v323 = vsel %vm164, %v287, 0
    %v326 = vsel %vm164, %v288, 0
    %v329 = vsel %vm164, %v289, 0
    %v332 = vsel %vm164, %v290, 0
    %v335 = vsel %vm164, %v291, 0
    %v338 = vsel %vm164, %v292, 0
    %v341 = vsel %vm164, %v293, 0
    %v344 = vsel %vm164, %v294, 0
    %346 = vmatpush.msra.mxu0 0.0
    %347 = vmatpush.msra.mxu0 0.0
    %348 = vmatpush.msra.mxu0 0.0
    %349 = vmatpush.msra.mxu0 0.0
    %350 = vmatpush.msra.mxu0 0.0
    %351 = vmatpush.msra.mxu0 0.0
    %352 = vmatpush.msra.mxu0 0.0
    %353 = vmatpush.msra.mxu0 0.0
    %354 = vmatpush.msra.mxu0 0.0
    %355 = vmatpush.msra.mxu0 0.0
    %356 = vmatpush.msra.mxu0 0.0
    %357 = vmatpush.msra.mxu0 0.0
    %358 = vmatpush.msra.mxu0 0.0
    %359 = vmatpush.msra.mxu0 0.0
    %360 = vmatpush.msra.mxu0 %v297
    %361 = vmatpush.msra.mxu0 %v296
    %362 = vmatmul.f32.gmra.mxu0 %v299
    %v363 = vpop.f32.mrf.mxu0
    %v364 = vadd.f32 0.0, %v363
    %365 = vmatmul.f32.gmra.mxu0 %v302
    %v366 = vpop.f32.mrf.mxu0
    %v367 = vadd.f32 0.0, %v366
    %368 = vmatmul.f32.gmra.mxu0 %v305
    %v369 = vpop.f32.mrf.mxu0
    %v370 = vadd.f32 0.0, %v369
    %371 = vmatmul.f32.gmra.mxu0 %v308
    %v372 = vpop.f32.mrf.mxu0
    %v373 = vadd.f32 0.0, %v372
    %374 = vmatmul.f32.gmra.mxu0 %v311
    %v375 = vpop.f32.mrf.mxu0
    %v376 = vadd.f32 0.0, %v375
    %377 = vmatmul.f32.gmra.mxu0 %v314
    %v378 = vpop.f32.mrf.mxu0
    %v379 = vadd.f32 0.0, %v378
    %380 = vmatmul.f32.gmra.mxu0 %v317
    %v381 = vpop.f32.mrf.mxu0
    %v382 = vadd.f32 0.0, %v381
    %383 = vmatmul.f32.gmra.mxu0 %v320
    %v384 = vpop.f32.mrf.mxu0
    %v385 = vadd.f32 0.0, %v384
    %386 = vmatmul.f32.gmra.mxu0 %v323
    %v387 = vpop.f32.mrf.mxu0
    %v388 = vadd.f32 0.0, %v387
    %389 = vmatmul.f32.gmra.mxu0 %v326
    %v390 = vpop.f32.mrf.mxu0
    %v391 = vadd.f32 0.0, %v390
    %392 = vmatmul.f32.gmra.mxu0 %v329
    %v393 = vpop.f32.mrf.mxu0
    %v394 = vadd.f32 0.0, %v393
    %395 = vmatmul.f32.gmra.mxu0 %v332
    %v396 = vpop.f32.mrf.mxu0
    %v397 = vadd.f32 0.0, %v396
    %398 = vmatmul.f32.gmra.mxu0 %v335
    %v399 = vpop.f32.mrf.mxu0
    %v400 = vadd.f32 0.0, %v399
    %401 = vmatmul.f32.gmra.mxu0 %v338
    %v402 = vpop.f32.mrf.mxu0
    %v403 = vadd.f32 0.0, %v402
    %404 = vmatmul.f32.gmra.mxu0 %v341
    %v405 = vpop.f32.mrf.mxu0
    %v406 = vadd.f32 0.0, %v405
    %407 = vmatmul.f32.gmra.mxu0 %v344
    %v408 = vpop.f32.mrf.mxu0
    %v409 = vadd.f32 0.0, %v408
    %410 = vdwg.mxu0
    %v411 = vadd.f32 %v231, %v364
    %v412 = vadd.f32 %v234, %v367
    %v413 = vadd.f32 %v237, %v370
    %v414 = vadd.f32 %v240, %v373
    %v415 = vadd.f32 %v243, %v376
    %v416 = vadd.f32 %v246, %v379
    %v417 = vadd.f32 %v249, %v382
    %v418 = vadd.f32 %v252, %v385
    %v419 = vadd.f32 %v255, %v388
    %v420 = vadd.f32 %v258, %v391
    %v421 = vadd.f32 %v261, %v394
    %v422 = vadd.f32 %v264, %v397
    %v423 = vadd.f32 %v267, %v400
    %v424 = vadd.f32 %v270, %v403
    %v425 = vadd.f32 %v273, %v406
    %v426 = vadd.f32 %v276, %v409
    %v427 = vld [vmem:[%s278 + $0x1] sm:$0xff]
    %v428 = vld [vmem:[%s278 + $0x11] sm:$0xff]
    %v429 = vld [vmem:[%s278 + $0x21] sm:$0xff]
    %v430 = vld [vmem:[%s278 + $0x31] sm:$0xff]
    %v431 = vld [vmem:[%s278 + $0x41] sm:$0xff]
    %v432 = vld [vmem:[%s278 + $0x51] sm:$0xff]
    %v433 = vld [vmem:[%s278 + $0x61] sm:$0xff]
    %v434 = vld [vmem:[%s278 + $0x71] sm:$0xff]
    %v435 = vld [vmem:[%s278 + $0x121] sm:$0xff]
    %v436 = vld [vmem:[%s278 + $0x131] sm:$0xff]
    %v437 = vld [vmem:[%s278 + $0x141] sm:$0xff]
    %v438 = vld [vmem:[%s278 + $0x151] sm:$0xff]
    %v439 = vld [vmem:[%s278 + $0x161] sm:$0xff]
    %v440 = vld [vmem:[%s278 + $0x171] sm:$0xff]
    %v441 = vld [vmem:[%s278 + $0x181] sm:$0xff]
    %v442 = vld [vmem:[%s278 + $0x191] sm:$0xff]
    %v443 = vld [vmem:[%s295 + $0x10] sm:$0xff]
    %v445 = vsel %vm50, %v427, 0
    %v448 = vsel %vm50, %v428, 0
    %v451 = vsel %vm50, %v429, 0
    %v454 = vsel %vm50, %v430, 0
    %v457 = vsel %vm50, %v431, 0
    %v460 = vsel %vm50, %v432, 0
    %v463 = vsel %vm50, %v433, 0
    %v466 = vsel %vm50, %v434, 0
    %v469 = vsel %vm50, %v435, 0
    %v472 = vsel %vm50, %v436, 0
    %v475 = vsel %vm50, %v437, 0
    %v478 = vsel %vm50, %v438, 0
    %v481 = vsel %vm50, %v439, 0
    %v484 = vsel %vm50, %v440, 0
    %v487 = vsel %vm50, %v441, 0
    %v490 = vsel %vm50, %v442, 0
    %492 = vmatpush.msra.mxu0 0.0
    %493 = vmatpush.msra.mxu0 0.0
    %494 = vmatpush.msra.mxu0 0.0
    %495 = vmatpush.msra.mxu0 0.0
    %496 = vmatpush.msra.mxu0 0.0
    %497 = vmatpush.msra.mxu0 0.0
    %498 = vmatpush.msra.mxu0 0.0
    %499 = vmatpush.msra.mxu0 0.0
    %500 = vmatpush.msra.mxu0 0.0
    %501 = vmatpush.msra.mxu0 0.0
    %502 = vmatpush.msra.mxu0 0.0
    %503 = vmatpush.msra.mxu0 0.0
    %504 = vmatpush.msra.mxu0 0.0
    %505 = vmatpush.msra.mxu0 0.0
    %506 = vmatpush.msra.mxu0 0.0
    %507 = vmatpush.msra.mxu0 %v443
    %508 = vmatmul.f32.gmra.mxu0 %v445
    %v509 = vpop.f32.mrf.mxu0
    %v510 = vadd.f32 0.0, %v509
    %511 = vmatmul.f32.gmra.mxu0 %v448
    %v512 = vpop.f32.mrf.mxu0
    %v513 = vadd.f32 0.0, %v512
    %514 = vmatmul.f32.gmra.mxu0 %v451
    %v515 = vpop.f32.mrf.mxu0
    %v516 = vadd.f32 0.0, %v515
    %517 = vmatmul.f32.gmra.mxu0 %v454
    %v518 = vpop.f32.mrf.mxu0
    %v519 = vadd.f32 0.0, %v518
    %520 = vmatmul.f32.gmra.mxu0 %v457
    %v521 = vpop.f32.mrf.mxu0
    %v522 = vadd.f32 0.0, %v521
    %523 = vmatmul.f32.gmra.mxu0 %v460
    %v524 = vpop.f32.mrf.mxu0
    %v525 = vadd.f32 0.0, %v524
    %526 = vmatmul.f32.gmra.mxu0 %v463
    %v527 = vpop.f32.mrf.mxu0
    %v528 = vadd.f32 0.0, %v527
    %529 = vmatmul.f32.gmra.mxu0 %v466
    %v530 = vpop.f32.mrf.mxu0
    %v531 = vadd.f32 0.0, %v530
    %532 = vmatmul.f32.gmra.mxu0 %v469
    %v533 = vpop.f32.mrf.mxu0
    %v534 = vadd.f32 0.0, %v533
    %535 = vmatmul.f32.gmra.mxu0 %v472
    %v536 = vpop.f32.mrf.mxu0
    %v537 = vadd.f32 0.0, %v536
    %538 = vmatmul.f32.gmra.mxu0 %v475
    %v539 = vpop.f32.mrf.mxu0
    %v540 = vadd.f32 0.0, %v539
    %541 = vmatmul.f32.gmra.mxu0 %v478
    %v542 = vpop.f32.mrf.mxu0
    %v543 = vadd.f32 0.0, %v542
    %544 = vmatmul.f32.gmra.mxu0 %v481
    %v545 = vpop.f32.mrf.mxu0
    %v546 = vadd.f32 0.0, %v545
    %547 = vmatmul.f32.gmra.mxu0 %v484
    %v548 = vpop.f32.mrf.mxu0
    %v549 = vadd.f32 0.0, %v548
    %550 = vmatmul.f32.gmra.mxu0 %v487
    %v551 = vpop.f32.mrf.mxu0
    %v552 = vadd.f32 0.0, %v551
    %553 = vmatmul.f32.gmra.mxu0 %v490
    %v554 = vpop.f32.mrf.mxu0
    %v555 = vadd.f32 0.0, %v554
    %556 = vdwg.mxu0
    %v557 = vadd.f32 %v411, %v510
    %v558 = vadd.f32 %v412, %v513
    %v559 = vadd.f32 %v413, %v516
    %v560 = vadd.f32 %v414, %v519
    %v561 = vadd.f32 %v415, %v522
    %v562 = vadd.f32 %v416, %v525
    %v563 = vadd.f32 %v417, %v528
    %v564 = vadd.f32 %v418, %v531
    %v565 = vadd.f32 %v419, %v534
    %v566 = vadd.f32 %v420, %v537
    %v567 = vadd.f32 %v421, %v540
    %v568 = vadd.f32 %v422, %v543
    %v569 = vadd.f32 %v423, %v546
    %v570 = vadd.f32 %v424, %v549
    %v571 = vadd.f32 %v425, %v552
    %v572 = vadd.f32 %v426, %v555
    %s573 = scalar_lea.vmem %s0, 16
    %v574 = vld [vmem:[%s573] sm:$0xff]
    %v575 = vld [vmem:[%s573 + $0x10] sm:$0xff]
    %v576 = vld [vmem:[%s573 + $0x20] sm:$0xff]
    %v577 = vld [vmem:[%s573 + $0x30] sm:$0xff]
    %v578 = vld [vmem:[%s573 + $0x40] sm:$0xff]
    %v579 = vld [vmem:[%s573 + $0x50] sm:$0xff]
    %v580 = vld [vmem:[%s573 + $0x60] sm:$0xff]
    %v581 = vld [vmem:[%s573 + $0x70] sm:$0xff]
    %v582 = vld [vmem:[%s573 + $0x120] sm:$0xff]
    %v583 = vld [vmem:[%s573 + $0x130] sm:$0xff]
    %v584 = vld [vmem:[%s573 + $0x140] sm:$0xff]
    %v585 = vld [vmem:[%s573 + $0x150] sm:$0xff]
    %v586 = vld [vmem:[%s573 + $0x160] sm:$0xff]
    %v587 = vld [vmem:[%s573 + $0x170] sm:$0xff]
    %v588 = vld [vmem:[%s573 + $0x180] sm:$0xff]
    %v589 = vld [vmem:[%s573 + $0x190] sm:$0xff]
    %s590 = scalar_lea.vmem %s1, 48
    %v591 = vld [vmem:[%s590] sm:$0xff]
    %v592 = vld [vmem:[%s590 + $0x8] sm:$0xff]
    %v594 = vsel %vm164, %v574, 0
    %v597 = vsel %vm164, %v575, 0
    %v600 = vsel %vm164, %v576, 0
    %v603 = vsel %vm164, %v577, 0
    %v606 = vsel %vm164, %v578, 0
    %v609 = vsel %vm164, %v579, 0
    %v612 = vsel %vm164, %v580, 0
    %v615 = vsel %vm164, %v581, 0
    %v618 = vsel %vm164, %v582, 0
    %v621 = vsel %vm164, %v583, 0
    %v624 = vsel %vm164, %v584, 0
    %v627 = vsel %vm164, %v585, 0
    %v630 = vsel %vm164, %v586, 0
    %v633 = vsel %vm164, %v587, 0
    %v636 = vsel %vm164, %v588, 0
    %v639 = vsel %vm164, %v589, 0
    %641 = vmatpush.msra.mxu0 0.0
    %642 = vmatpush.msra.mxu0 0.0
    %643 = vmatpush.msra.mxu0 0.0
    %644 = vmatpush.msra.mxu0 0.0
    %645 = vmatpush.msra.mxu0 0.0
    %646 = vmatpush.msra.mxu0 0.0
    %647 = vmatpush.msra.mxu0 0.0
    %648 = vmatpush.msra.mxu0 0.0
    %649 = vmatpush.msra.mxu0 0.0
    %650 = vmatpush.msra.mxu0 0.0
    %651 = vmatpush.msra.mxu0 0.0
    %652 = vmatpush.msra.mxu0 0.0
    %653 = vmatpush.msra.mxu0 0.0
    %654 = vmatpush.msra.mxu0 0.0
    %655 = vmatpush.msra.mxu0 %v592
    %656 = vmatpush.msra.mxu0 %v591
    %657 = vmatmul.f32.gmra.mxu0 %v594
    %v658 = vpop.f32.mrf.mxu0
    %v659 = vadd.f32 0.0, %v658
    %660 = vmatmul.f32.gmra.mxu0 %v597
    %v661 = vpop.f32.mrf.mxu0
    %v662 = vadd.f32 0.0, %v661
    %663 = vmatmul.f32.gmra.mxu0 %v600
    %v664 = vpop.f32.mrf.mxu0
    %v665 = vadd.f32 0.0, %v664
    %666 = vmatmul.f32.gmra.mxu0 %v603
    %v667 = vpop.f32.mrf.mxu0
    %v668 = vadd.f32 0.0, %v667
    %669 = vmatmul.f32.gmra.mxu0 %v606
    %v670 = vpop.f32.mrf.mxu0
    %v671 = vadd.f32 0.0, %v670
    %672 = vmatmul.f32.gmra.mxu0 %v609
    %v673 = vpop.f32.mrf.mxu0
    %v674 = vadd.f32 0.0, %v673
    %675 = vmatmul.f32.gmra.mxu0 %v612
    %v676 = vpop.f32.mrf.mxu0
    %v677 = vadd.f32 0.0, %v676
    %678 = vmatmul.f32.gmra.mxu0 %v615
    %v679 = vpop.f32.mrf.mxu0
    %v680 = vadd.f32 0.0, %v679
    %681 = vmatmul.f32.gmra.mxu0 %v618
    %v682 = vpop.f32.mrf.mxu0
    %v683 = vadd.f32 0.0, %v682
    %684 = vmatmul.f32.gmra.mxu0 %v621
    %v685 = vpop.f32.mrf.mxu0
    %v686 = vadd.f32 0.0, %v685
    %687 = vmatmul.f32.gmra.mxu0 %v624
    %v688 = vpop.f32.mrf.mxu0
    %v689 = vadd.f32 0.0, %v688
    %690 = vmatmul.f32.gmra.mxu0 %v627
    %v691 = vpop.f32.mrf.mxu0
    %v692 = vadd.f32 0.0, %v691
    %693 = vmatmul.f32.gmra.mxu0 %v630
    %v694 = vpop.f32.mrf.mxu0
    %v695 = vadd.f32 0.0, %v694
    %696 = vmatmul.f32.gmra.mxu0 %v633
    %v697 = vpop.f32.mrf.mxu0
    %v698 = vadd.f32 0.0, %v697
    %699 = vmatmul.f32.gmra.mxu0 %v636
    %v700 = vpop.f32.mrf.mxu0
    %v701 = vadd.f32 0.0, %v700
    %702 = vmatmul.f32.gmra.mxu0 %v639
    %v703 = vpop.f32.mrf.mxu0
    %v704 = vadd.f32 0.0, %v703
    %705 = vdwg.mxu0
    %v706 = vadd.f32 %v557, %v659
    %v707 = vadd.f32 %v558, %v662
    %v708 = vadd.f32 %v559, %v665
    %v709 = vadd.f32 %v560, %v668
    %v710 = vadd.f32 %v561, %v671
    %v711 = vadd.f32 %v562, %v674
    %v712 = vadd.f32 %v563, %v677
    %v713 = vadd.f32 %v564, %v680
    %v714 = vadd.f32 %v565, %v683
    %v715 = vadd.f32 %v566, %v686
    %v716 = vadd.f32 %v567, %v689
    %v717 = vadd.f32 %v568, %v692
    %v718 = vadd.f32 %v569, %v695
    %v719 = vadd.f32 %v570, %v698
    %v720 = vadd.f32 %v571, %v701
    %v721 = vadd.f32 %v572, %v704
    %v722 = vld [vmem:[%s573 + $0x1] sm:$0xff]
    %v723 = vld [vmem:[%s573 + $0x11] sm:$0xff]
    %v724 = vld [vmem:[%s573 + $0x21] sm:$0xff]
    %v725 = vld [vmem:[%s573 + $0x31] sm:$0xff]
    %v726 = vld [vmem:[%s573 + $0x41] sm:$0xff]
    %v727 = vld [vmem:[%s573 + $0x51] sm:$0xff]
    %v728 = vld [vmem:[%s573 + $0x61] sm:$0xff]
    %v729 = vld [vmem:[%s573 + $0x71] sm:$0xff]
    %v730 = vld [vmem:[%s573 + $0x121] sm:$0xff]
    %v731 = vld [vmem:[%s573 + $0x131] sm:$0xff]
    %v732 = vld [vmem:[%s573 + $0x141] sm:$0xff]
    %v733 = vld [vmem:[%s573 + $0x151] sm:$0xff]
    %v734 = vld [vmem:[%s573 + $0x161] sm:$0xff]
    %v735 = vld [vmem:[%s573 + $0x171] sm:$0xff]
    %v736 = vld [vmem:[%s573 + $0x181] sm:$0xff]
    %v737 = vld [vmem:[%s573 + $0x191] sm:$0xff]
    %v738 = vld [vmem:[%s590 + $0x10] sm:$0xff]
    %v740 = vsel %vm50, %v722, 0
    %v743 = vsel %vm50, %v723, 0
    %v746 = vsel %vm50, %v724, 0
    %v749 = vsel %vm50, %v725, 0
    %v752 = vsel %vm50, %v726, 0
    %v755 = vsel %vm50, %v727, 0
    %v758 = vsel %vm50, %v728, 0
    %v761 = vsel %vm50, %v729, 0
    %v764 = vsel %vm50, %v730, 0
    %v767 = vsel %vm50, %v731, 0
    %v770 = vsel %vm50, %v732, 0
    %v773 = vsel %vm50, %v733, 0
    %v776 = vsel %vm50, %v734, 0
    %v779 = vsel %vm50, %v735, 0
    %v782 = vsel %vm50, %v736, 0
    %v785 = vsel %vm50, %v737, 0
    %787 = vmatpush.msra.mxu0 0.0
    %788 = vmatpush.msra.mxu0 0.0
    %789 = vmatpush.msra.mxu0 0.0
    %790 = vmatpush.msra.mxu0 0.0
    %791 = vmatpush.msra.mxu0 0.0
    %792 = vmatpush.msra.mxu0 0.0
    %793 = vmatpush.msra.mxu0 0.0
    %794 = vmatpush.msra.mxu0 0.0
    %795 = vmatpush.msra.mxu0 0.0
    %796 = vmatpush.msra.mxu0 0.0
    %797 = vmatpush.msra.mxu0 0.0
    %798 = vmatpush.msra.mxu0 0.0
    %799 = vmatpush.msra.mxu0 0.0
    %800 = vmatpush.msra.mxu0 0.0
    %801 = vmatpush.msra.mxu0 0.0
    %802 = vmatpush.msra.mxu0 %v738
    %803 = vmatmul.f32.gmra.mxu0 %v740
    %v804 = vpop.f32.mrf.mxu0
    %v805 = vadd.f32 0.0, %v804
    %806 = vmatmul.f32.gmra.mxu0 %v743
    %v807 = vpop.f32.mrf.mxu0
    %v808 = vadd.f32 0.0, %v807
    %809 = vmatmul.f32.gmra.mxu0 %v746
    %v810 = vpop.f32.mrf.mxu0
    %v811 = vadd.f32 0.0, %v810
    %812 = vmatmul.f32.gmra.mxu0 %v749
    %v813 = vpop.f32.mrf.mxu0
    %v814 = vadd.f32 0.0, %v813
    %815 = vmatmul.f32.gmra.mxu0 %v752
    %v816 = vpop.f32.mrf.mxu0
    %v817 = vadd.f32 0.0, %v816
    %818 = vmatmul.f32.gmra.mxu0 %v755
    %v819 = vpop.f32.mrf.mxu0
    %v820 = vadd.f32 0.0, %v819
    %821 = vmatmul.f32.gmra.mxu0 %v758
    %v822 = vpop.f32.mrf.mxu0
    %v823 = vadd.f32 0.0, %v822
    %824 = vmatmul.f32.gmra.mxu0 %v761
    %v825 = vpop.f32.mrf.mxu0
    %v826 = vadd.f32 0.0, %v825
    %827 = vmatmul.f32.gmra.mxu0 %v764
    %v828 = vpop.f32.mrf.mxu0
    %v829 = vadd.f32 0.0, %v828
    %830 = vmatmul.f32.gmra.mxu0 %v767
    %v831 = vpop.f32.mrf.mxu0
    %v832 = vadd.f32 0.0, %v831
    %833 = vmatmul.f32.gmra.mxu0 %v770
    %v834 = vpop.f32.mrf.mxu0
    %v835 = vadd.f32 0.0, %v834
    %836 = vmatmul.f32.gmra.mxu0 %v773
    %v837 = vpop.f32.mrf.mxu0
    %v838 = vadd.f32 0.0, %v837
    %839 = vmatmul.f32.gmra.mxu0 %v776
    %v840 = vpop.f32.mrf.mxu0
    %v841 = vadd.f32 0.0, %v840
    %842 = vmatmul.f32.gmra.mxu0 %v779
    %v843 = vpop.f32.mrf.mxu0
    %v844 = vadd.f32 0.0, %v843
    %845 = vmatmul.f32.gmra.mxu0 %v782
    %v846 = vpop.f32.mrf.mxu0
    %v847 = vadd.f32 0.0, %v846
    %848 = vmatmul.f32.gmra.mxu0 %v785
    %v849 = vpop.f32.mrf.mxu0
    %v850 = vadd.f32 0.0, %v849
    %851 = vdwg.mxu0
    %v852 = vadd.f32 %v706, %v805
    %v853 = vadd.f32 %v707, %v808
    %v854 = vadd.f32 %v708, %v811
    %v855 = vadd.f32 %v709, %v814
    %v856 = vadd.f32 %v710, %v817
    %v857 = vadd.f32 %v711, %v820
    %v858 = vadd.f32 %v712, %v823
    %v859 = vadd.f32 %v713, %v826
    %v860 = vadd.f32 %v714, %v829
    %v861 = vadd.f32 %v715, %v832
    %v862 = vadd.f32 %v716, %v835
    %v863 = vadd.f32 %v717, %v838
    %v864 = vadd.f32 %v718, %v841
    %v865 = vadd.f32 %v719, %v844
    %v866 = vadd.f32 %v720, %v847
    %v867 = vadd.f32 %v721, %v850
    %v868 = vld [vmem:[%s2] sm:$0x1]
    %v870 = vperm.slane %v868, 0
    %v872 = vadd.f32 %v852, %v870
    %v873 = vadd.f32 %v853, %v870
    %v874 = vadd.f32 %v854, %v870
    %v875 = vadd.f32 %v855, %v870
    %v876 = vadd.f32 %v856, %v870
    %v877 = vadd.f32 %v857, %v870
    %v878 = vadd.f32 %v858, %v870
    %v879 = vadd.f32 %v859, %v870
    %v880 = vadd.f32 %v860, %v870
    %v881 = vadd.f32 %v861, %v870
    %v882 = vadd.f32 %v862, %v870
    %v883 = vadd.f32 %v863, %v870
    %v884 = vadd.f32 %v864, %v870
    %v885 = vadd.f32 %v865, %v870
    %v886 = vadd.f32 %v866, %v870
    %v887 = vadd.f32 %v867, %v870
    %888 = vst [vmem:[#allocation2] sm:$0xff] %v872
    %889 = vst [vmem:[#allocation2 + $0x8] sm:$0xff] %v873
    %890 = vst [vmem:[#allocation2 + $0x10] sm:$0xff] %v874
    %891 = vst [vmem:[#allocation2 + $0x18] sm:$0xff] %v875
    %892 = vst [vmem:[#allocation2 + $0x20] sm:$0xff] %v876
    %893 = vst [vmem:[#allocation2 + $0x28] sm:$0xff] %v877
    %894 = vst [vmem:[#allocation2 + $0x30] sm:$0xff] %v878
    %895 = vst [vmem:[#allocation2 + $0x38] sm:$0xff] %v879
    %896 = vst [vmem:[#allocation2 + $0x40] sm:$0xff] %v880
    %897 = vst [vmem:[#allocation2 + $0x48] sm:$0xff] %v881
    %898 = vst [vmem:[#allocation2 + $0x50] sm:$0xff] %v882
    %899 = vst [vmem:[#allocation2 + $0x58] sm:$0xff] %v883
    %900 = vst [vmem:[#allocation2 + $0x60] sm:$0xff] %v884
    %901 = vst [vmem:[#allocation2 + $0x68] sm:$0xff] %v885
    %902 = vst [vmem:[#allocation2 + $0x70] sm:$0xff] %v886
    %903 = vst [vmem:[#allocation2 + $0x78] sm:$0xff] %v887
    // Predicated region
    $region14: #{tpu_custom_call.1} parent=1 // pred_check
      _
    $region15: #{tpu_custom_call.1} parent=1 // pred_check_branch
      %905 = sbr.rel (0) target = $region17
    $region16: #{tpu_custom_call.1} parent=1 // pred_region
      %907 = vsyncadd [#allocation3], 0
      %s908 = sshll.u32 [#allocation2], 4
      %s909 = int_to_ptr.vmem [resolvable:$true] %s908
      %s910 = sshll.u32 %s3, 4
      %s911 = int_to_ptr.hbm [resolvable:$true] %s910
      %916 = dma.vmem_to_hbm [thread:$0]  %s909, 2048, %s911, [#allocation3], 128, 128, 8
    $region17: #{tpu_custom_call.1} parent=1 // pred_fallthru
      _
    // Predicated region
    $region18: #{tpu_custom_call.1} parent=1 // pred_check
      _
    $region19: #{tpu_custom_call.1} parent=1 // pred_check_branch
      %918 = sbr.rel (0) target = $region21
    $region20: #{tpu_custom_call.1} parent=1 // pred_region
      %920 = dma.done [#allocation3], 2048
    $region21: #{tpu_custom_call.1} parent=1 // pred_fallthru
      _
    %921 = vsyncpa [#allocation3], 1

</llo_original>
